<compile_context>
chip_gen: v7x
topology: tpu7x:2x2x1
jax: 0.10.0
libtpu: 0.0.40
codegen_flags: <defaults>
</compile_context>

<pallas_src>
import functools

import jax
import jax.numpy as jnp
from jax.experimental import pallas as pl
from jax.experimental.pallas import tpu as pltpu


def _mse_softmax_kernel(pred_ref, tgt_ref, acc_ref, *, hw_valid, tile_hw, need_mask):
    """One (n, j) grid step.

    pred_ref / tgt_ref : (1, C, tile_hw) logit tiles (C on sublanes, HW on lanes).
    acc_ref            : (1, 1, tile_hw) f32 output block, resident across j,
                         accumulates channel-summed squared softmax differences.
    """
    j = pl.program_id(1)

    @pl.when(j == 0)
    def _():
        acc_ref[...] = jnp.zeros_like(acc_ref)

    p = pred_ref[...].astype(jnp.float32)
    t = tgt_ref[...].astype(jnp.float32)

    # Numerically stable channel softmax (axis=1 == sublane axis).
    p = p - jnp.max(p, axis=1, keepdims=True)
    t = t - jnp.max(t, axis=1, keepdims=True)
    ep = jnp.exp(p)
    et = jnp.exp(t)
    sp = jnp.sum(ep, axis=1, keepdims=True)
    st = jnp.sum(et, axis=1, keepdims=True)

    # EUP approx reciprocal + one Newton-Raphson step (restores ~f32 accuracy).
    inv_p = pl.reciprocal(sp, approx=True)
    inv_p = inv_p * (2.0 - sp * inv_p)
    inv_t = pl.reciprocal(st, approx=True)
    inv_t = inv_t * (2.0 - st * inv_t)

    d = ep * inv_p - et * inv_t
    # Reduce the channel axis now (XLU, free slot) so the resident accumulator
    # and the HBM partials are C times smaller.
    sq_c = jnp.sum(d * d, axis=1, keepdims=True)  # (1, 1, tile_hw)

    if need_mask:
        # Last spatial tile may run past H*W; zero the out-of-range lanes
        # (select also squashes any NaN/Inf produced from unspecified OOB reads).
        col = j * tile_hw + jax.lax.broadcasted_iota(jnp.int32, sq_c.shape, 2)
        sq_c = jnp.where(col < hw_valid, sq_c, 0.0)

    acc_ref[...] += sq_c


def _choose_tile_hw(hw, c, itemsize, target_block_bytes=1 << 20):
    """Lane-axis tile: multiple of 128, ~target_block_bytes per input block.

    Budget stays ~5 MiB total (2 inputs x 2 pipeline buffers + small resident
    output block), well under the scoped-VMEM defaults on v5e/v6e/v7x.
    """
    t = max(1, target_block_bytes // max(1, c * itemsize))
    t = max(128, (t // 128) * 128)
    if hw <= t:
        return hw  # full spatial extent in one block (legal for any hw)
    return t


def mse_loss_2d(output, target):
    """MSE(softmax(output, dim=1), softmax(target, dim=1)), mean reduction."""
    assert output.shape == target.shape
    N, C, H, W = output.shape
    HW = H * W
    total = N * C * HW

    # Free reshape only -- keep the native NCHW memory layout (no transpose/pad).
    o3 = output.reshape(N, C, HW)
    t3 = target.reshape(N, C, HW)

    tile_hw = _choose_tile_hw(HW, C, o3.dtype.itemsize)
    n_hw_tiles = pl.cdiv(HW, tile_hw)
    need_mask = (HW % tile_hw) != 0

    kernel = functools.partial(
        _mse_softmax_kernel, hw_valid=HW, tile_hw=tile_hw, need_mask=need_mask
    )

    partials = pl.pallas_call(
        kernel,
        out_shape=jax.ShapeDtypeStruct((N, 1, tile_hw), jnp.float32),
        grid_spec=pltpu.PrefetchScalarGridSpec(
            num_scalar_prefetch=0,
            grid=(N, n_hw_tiles),
            in_specs=[
                pl.BlockSpec((1, C, tile_hw), lambda n, j: (n, 0, j)),
                pl.BlockSpec((1, C, tile_hw), lambda n, j: (n, 0, j)),
            ],
            out_specs=pl.BlockSpec((1, 1, tile_hw), lambda n, j: (n, 0, 0)),
        ),
        compiler_params=pltpu.CompilerParams(
            dimension_semantics=("parallel", "arbitrary"),
        ),
    )(o3, t3)

    # Tiny final reduction of the per-(sample, lane) partial sums.
    return jnp.sum(partials) / jnp.float32(total)


def _reference(output, target):
    so = jax.nn.softmax(output.astype(jnp.float32), axis=1)
    st = jax.nn.softmax(target.astype(jnp.float32), axis=1)
    return jnp.mean((so - st) ** 2)


if __name__ == "__main__":
    key = jax.random.PRNGKey(0)
    k1, k2 = jax.random.split(key)
    N, C, H, W = 2, 4, 16, 16
    output = jax.random.normal(k1, (N, C, H, W), dtype=jnp.float32)
    target = jax.random.normal(k2, (N, C, H, W), dtype=jnp.float32)

    loss = jax.block_until_ready(mse_loss_2d(output, target))
    ref = jax.block_until_ready(_reference(output, target))

    assert jnp.allclose(loss, ref, rtol=1e-5, atol=1e-6), (loss, ref)
    print("KERNEL_OK")
</pallas_src>

<mosaic_0001>
module attributes {stable_mosaic.version = 11 : i64} {
  func.func @_mse_softmax_kernel(%arg0: i32, %arg1: i32, %arg2: memref<1x4x256xf32, #tpu.memory_space<vmem>>, %arg3: memref<1x4x256xf32, #tpu.memory_space<vmem>>, %arg4: memref<1x1x256xf32, #tpu.memory_space<vmem>>) attributes {dimension_semantics = [#tpu.dimension_semantics<parallel>, #tpu.dimension_semantics<arbitrary>], iteration_bounds = array<i64: 2, 1>, scalar_prefetch = 0 : i64, scratch_operands = 0 : i64, tpu.core_type = #tpu.core_type<tc>, window_params = [{transform_indices = @transform_0, window_bounds = array<i64: 1, 4, 256>}, {transform_indices = @transform_1, window_bounds = array<i64: 1, 4, 256>}, {transform_indices = @transform_2, window_bounds = array<i64: 1, 1, 256>}]} {
    %c0_i32 = arith.constant 0 : i32
    %0 = arith.cmpi eq, %arg1, %c0_i32 : i32
    %1 = arith.extui %0 : i1 to i32
    %c0_i32_0 = arith.constant 0 : i32
    %2 = arith.cmpi ne, %1, %c0_i32_0 : i32
    scf.if %2 {
      %cst_18 = arith.constant 0.000000e+00 : f32
      %40 = vector.broadcast %cst_18 : f32 to vector<1x1x256xf32>
      %c0_19 = arith.constant 0 : index
      %c0_20 = arith.constant 0 : index
      %c0_21 = arith.constant 0 : index
      %41 = vector.load %arg4[%c0_19, %c0_20, %c0_21] : memref<1x1x256xf32, #tpu.memory_space<vmem>>, vector<1x1x256xf32>
      tpu.vector_store %arg4[%c0_19, %c0_20, %c0_21], %40 {strides = array<i32>} : memref<1x1x256xf32, #tpu.memory_space<vmem>>, vector<1x1x256xf32>,
    } else {
    }
    %c0 = arith.constant 0 : index
    %c0_1 = arith.constant 0 : index
    %c0_2 = arith.constant 0 : index
    %3 = vector.load %arg2[%c0, %c0_1, %c0_2] : memref<1x4x256xf32, #tpu.memory_space<vmem>>, vector<1x4x256xf32>
    %c0_3 = arith.constant 0 : index
    %c0_4 = arith.constant 0 : index
    %c0_5 = arith.constant 0 : index
    %4 = vector.load %arg3[%c0_3, %c0_4, %c0_5] : memref<1x4x256xf32, #tpu.memory_space<vmem>>, vector<1x4x256xf32>
    %cst = arith.constant dense<0xFF800000> : vector<1x256xf32>
    %5 = vector.multi_reduction <maximumf>, %3, %cst [1] : vector<1x4x256xf32> to vector<1x256xf32>
    %6 = vector.shape_cast %5 : vector<1x256xf32> to vector<1x1x256xf32>
    %7 = vector.broadcast %6 : vector<1x1x256xf32> to vector<1x4x256xf32>
    %8 = arith.subf %3, %7 : vector<1x4x256xf32>
    %cst_6 = arith.constant dense<0xFF800000> : vector<1x256xf32>
    %9 = vector.multi_reduction <maximumf>, %4, %cst_6 [1] : vector<1x4x256xf32> to vector<1x256xf32>
    %10 = vector.shape_cast %9 : vector<1x256xf32> to vector<1x1x256xf32>
    %11 = vector.broadcast %10 : vector<1x1x256xf32> to vector<1x4x256xf32>
    %12 = arith.subf %4, %11 : vector<1x4x256xf32>
    %13 = math.exp %8 : vector<1x4x256xf32>
    %14 = math.exp %12 : vector<1x4x256xf32>
    %cst_7 = arith.constant dense<0.000000e+00> : vector<1x256xf32>
    %15 = vector.multi_reduction <add>, %13, %cst_7 [1] : vector<1x4x256xf32> to vector<1x256xf32>
    %16 = vector.shape_cast %15 : vector<1x256xf32> to vector<1x1x256xf32>
    %cst_8 = arith.constant dense<0.000000e+00> : vector<1x256xf32>
    %17 = vector.multi_reduction <add>, %14, %cst_8 [1] : vector<1x4x256xf32> to vector<1x256xf32>
    %18 = vector.shape_cast %17 : vector<1x256xf32> to vector<1x1x256xf32>
    %19 = tpu.reciprocal %16 {approx = true} : vector<1x1x256xf32> -> vector<1x1x256xf32>
    %20 = arith.mulf %16, %19 : vector<1x1x256xf32>
    %cst_9 = arith.constant 2.000000e+00 : f32
    %21 = vector.broadcast %cst_9 : f32 to vector<1x1x256xf32>
    %22 = arith.subf %21, %20 : vector<1x1x256xf32>
    %23 = arith.mulf %19, %22 : vector<1x1x256xf32>
    %24 = tpu.reciprocal %18 {approx = true} : vector<1x1x256xf32> -> vector<1x1x256xf32>
    %25 = arith.mulf %18, %24 : vector<1x1x256xf32>
    %cst_10 = arith.constant 2.000000e+00 : f32
    %26 = vector.broadcast %cst_10 : f32 to vector<1x1x256xf32>
    %27 = arith.subf %26, %25 : vector<1x1x256xf32>
    %28 = arith.mulf %24, %27 : vector<1x1x256xf32>
    %29 = vector.broadcast %23 : vector<1x1x256xf32> to vector<1x4x256xf32>
    %30 = arith.mulf %13, %29 : vector<1x4x256xf32>
    %31 = vector.broadcast %28 : vector<1x1x256xf32> to vector<1x4x256xf32>
    %32 = arith.mulf %14, %31 : vector<1x4x256xf32>
    %33 = arith.subf %30, %32 : vector<1x4x256xf32>
    %34 = arith.mulf %33, %33 : vector<1x4x256xf32>
    %cst_11 = arith.constant dense<0.000000e+00> : vector<1x256xf32>
    %35 = vector.multi_reduction <add>, %34, %cst_11 [1] : vector<1x4x256xf32> to vector<1x256xf32>
    %36 = vector.shape_cast %35 : vector<1x256xf32> to vector<1x1x256xf32>
    %c0_12 = arith.constant 0 : index
    %c0_13 = arith.constant 0 : index
    %c0_14 = arith.constant 0 : index
    %37 = vector.load %arg4[%c0_12, %c0_13, %c0_14] : memref<1x1x256xf32, #tpu.memory_space<vmem>>, vector<1x1x256xf32>
    %38 = arith.addf %37, %36 : vector<1x1x256xf32>
    %c0_15 = arith.constant 0 : index
    %c0_16 = arith.constant 0 : index
    %c0_17 = arith.constant 0 : index
    %39 = vector.load %arg4[%c0_15, %c0_16, %c0_17] : memref<1x1x256xf32, #tpu.memory_space<vmem>>, vector<1x1x256xf32>
    tpu.vector_store %arg4[%c0_15, %c0_16, %c0_17], %38 {strides = array<i32>} : memref<1x1x256xf32, #tpu.memory_space<vmem>>, vector<1x1x256xf32>,
    return
  }
  func.func @transform_0(%arg0: i32, %arg1: i32) -> (i32, i32, i32) {
    %c0_i32 = arith.constant 0 : i32
    %c0_i32_0 = arith.constant 0 : i32
    return %arg0, %c0_i32, %arg1 : i32, i32, i32
  }
  func.func @transform_1(%arg0: i32, %arg1: i32) -> (i32, i32, i32) {
    %c0_i32 = arith.constant 0 : i32
    %c0_i32_0 = arith.constant 0 : i32
    return %arg0, %c0_i32, %arg1 : i32, i32, i32
  }
  func.func @transform_2(%arg0: i32, %arg1: i32) -> (i32, i32, i32) {
    %c0_i32 = arith.constant 0 : i32
    %c0_i32_0 = arith.constant 0 : i32
    %c0_i32_1 = arith.constant 0 : i32
    return %arg0, %c0_i32, %c0_i32_0 : i32, i32, i32
  }
}

</mosaic_0001>

<llo_original>
// kernel: tpu_custom_call.1
$region0: #{tpu_custom_call.1}
  #allocation0 [shape = 'u32[]', space=smem, size = 0x4, offset = 0x4, fixed_abs, tag = 'smem constant byte address 0x4 - core index']
  #allocation1 [shape = 'u32[144,128]{1,0:T(1,128)}', space=vmem, size = 0x12000, scoped, tag = 'internal scratch']
  %s0 = inlined_call_operand.hbm [shape: f32[2,4,256], index: 0, kind: input, shape index: {}]
  %s1 = inlined_call_operand.hbm [shape: f32[2,4,256], index: 1, kind: input, shape index: {}]
  %s2 = inlined_call_operand.hbm [shape: f32[2,1,256], index: 2, kind: output, shape index: {}]
  %s3 = sld [smem:[#allocation0]]
  $region53: #{tpu_custom_call.1} parent=0
    _
  %s5 = ssub.s32 1, %s3
  %s6 = scalar_select 0, %s5, %s3
  $region1: #{tpu_custom_call.1} parent=0
    #allocation2 [shape = 'u8[8192]{0}', space=vmem, size = 0x2000, scoped, tag = 'input window, operand 0']
    #allocation3 [shape = 's32[2]{0}', space=sflag, size = 0x8, scoped, tag = 'scoped memory for tpu_custom_call.1']
    #allocation4 [shape = 's32[2]{0}', space=sflag, size = 0x8, scoped, tag = 'scoped memory for tpu_custom_call.1']
    #allocation5 [shape = 'u8[8192]{0}', space=vmem, size = 0x2000, scoped, tag = 'input window, operand 1']
    #allocation6 [shape = 's32[2]{0}', space=sflag, size = 0x8, scoped, tag = 'scoped memory for tpu_custom_call.1']
    #allocation7 [shape = 'u8[2048]{0}', space=vmem, size = 0x800, scoped, tag = 'output window, operand 0']
    %7 = vsyncpa [#allocation3], 0
    %s8 = scalar_lea.sflag [#allocation3], 1
    %9 = vsyncpa %s8, 0
    %10 = vsyncpa [#allocation6], 0
    %s11 = scalar_lea.sflag [#allocation6], 1
    %12 = vsyncpa %s11, 0
    %13 = vsyncpa [#allocation4], 0
    %s14 = scalar_lea.sflag [#allocation4], 1
    %15 = vsyncpa %s14, 0
    loop: start=0, step=1, limit=4
    $region2: #{tpu_custom_call.1} parent=1 // loop_pre_header
      _
    $region3: #{tpu_custom_call.1} parent=1 // loop_header
      %s17 = sphi 0, %s21
      %p18 = scmp.ge.s32.totalorder %s17, 4
      %s24 = sphi 0, %s36
      %s25 = sphi 0, %s32
      %s26 = sphi 0, %s24
      %s27 = sphi 0, %s25
      %s28 = sphi 0, %s26
      %s29 = sphi 0, %s27
      %s41 = sphi 0, %s43
      %s44 = sphi 0, %s41
      %s45 = sphi 0, %s44
      %s61 = sphi 0, %s45
      %s69 = sphi 0, %s71
      %s72 = sphi 0, %s69
      %s73 = sphi 0, %s72
      %s89 = sphi 0, %s73
      %s95 = sphi 0, %s97
      %s98 = sphi 0, %s95
      %s99 = sphi 0, %s98
      %s115 = sphi 0, %s99
    $region4: #{tpu_custom_call.1} parent=1 // loop_header_branch
      %20 = sbr.rel (%p18) target = $region8
    $region5: #{tpu_custom_call.1} parent=1 // loop_body
      %s22 = ssub.s32 %s17, 1
      %s23 = ssub.s32 %s17, 2
      %s30 = sadd.s32 1, %s25
      %p31 = scmp.ge.s32.totalorder %s30, 1
      %s32 = scalar_select %p31, 0, %s30
      %s33 = sadd.s32 1, %s24
      %s34 = scalar_select %p31, %s33, %s24
      %p35 = scmp.ge.s32.totalorder %s34, 2
      %s36 = scalar_select %p35, 0, %s34
      %s37 = ssub.s32 %s24, %s36
      %s38 = ssub.s32 %s25, %s32
      %s39 = sor.u32 %s37, %s38
      %p40 = scmp.eq.s32.totalorder %s39, 0
      %s42 = sadd.s32 %s41, 1
      %s43 = scalar_select %p40, %s41, %s42
      %p46 = pneg %p40
      %p47 = scmp.eq.s32.totalorder %s17, 1
      %p48 = por %p46, %p47
      %p49 = scmp.ne.s32.totalorder %s41, %s44
      %p50 = scmp.eq.s32.totalorder %s17, 0
      %p51 = por %p49, %p50
      %p52 = scmp.ne.s32.totalorder %s41, %s44
      %p53 = scmp.eq.s32.totalorder %s22, 1
      %p54 = por %p52, %p53
      %p55 = scmp.ne.s32.totalorder %s44, %s45
      %p56 = scmp.eq.s32.totalorder %s22, 0
      %p57 = por %p55, %p56
      %p58 = scmp.ne.s32.totalorder %s44, %s45
      %p59 = scmp.eq.s32.totalorder %s23, 1
      %p60 = por %p58, %p59
      %p62 = scmp.ne.s32.totalorder %s45, %s61
      %p63 = scmp.eq.s32.totalorder %s23, 0
      %p64 = por %p62, %p63
      %s65 = ssub.s32 %s24, %s36
      %s66 = ssub.s32 %s25, %s32
      %s67 = sor.u32 %s65, %s66
      %p68 = scmp.eq.s32.totalorder %s67, 0
      %s70 = sadd.s32 %s69, 1
      %s71 = scalar_select %p68, %s69, %s70
      %p74 = pneg %p68
      %p75 = scmp.eq.s32.totalorder %s17, 1
      %p76 = por %p74, %p75
      %p77 = scmp.ne.s32.totalorder %s69, %s72
      %p78 = scmp.eq.s32.totalorder %s17, 0
      %p79 = por %p77, %p78
      %p80 = scmp.ne.s32.totalorder %s69, %s72
      %p81 = scmp.eq.s32.totalorder %s22, 1
      %p82 = por %p80, %p81
      %p83 = scmp.ne.s32.totalorder %s72, %s73
      %p84 = scmp.eq.s32.totalorder %s22, 0
      %p85 = por %p83, %p84
      %p86 = scmp.ne.s32.totalorder %s72, %s73
      %p87 = scmp.eq.s32.totalorder %s23, 1
      %p88 = por %p86, %p87
      %p90 = scmp.ne.s32.totalorder %s73, %s89
      %p91 = scmp.eq.s32.totalorder %s23, 0
      %p92 = por %p90, %p91
      %s93 = ssub.s32 %s24, %s36
      %p94 = scmp.eq.s32.totalorder %s93, 0
      %s96 = sadd.s32 %s95, 1
      %s97 = scalar_select %p94, %s95, %s96
      %p100 = pneg %p94
      %p101 = scmp.eq.s32.totalorder %s17, 1
      %p102 = por %p100, %p101
      %p103 = scmp.ne.s32.totalorder %s95, %s98
      %p104 = scmp.eq.s32.totalorder %s17, 0
      %p105 = por %p103, %p104
      %p106 = scmp.ne.s32.totalorder %s95, %s98
      %p107 = scmp.eq.s32.totalorder %s22, 1
      %p108 = por %p106, %p107
      %p109 = scmp.ne.s32.totalorder %s98, %s99
      %p110 = scmp.eq.s32.totalorder %s22, 0
      %p111 = por %p109, %p110
      %p112 = scmp.ne.s32.totalorder %s98, %s99
      %p113 = scmp.eq.s32.totalorder %s23, 1
      %p114 = por %p112, %p113
      %p116 = scmp.ne.s32.totalorder %s99, %s115
      %p117 = scmp.eq.s32.totalorder %s23, 0
      %p118 = por %p116, %p117
      %p119 = scmp.le.s32.totalorder 1, %s17
      %p120 = scmp.lt.s32.totalorder %s17, 3
      %p121 = pnand %p119, %p120
      %p122 = pneg %p121
      // Predicated region
      $region9: #{tpu_custom_call.1} parent=5 // pred_check
        _
      $region10: #{tpu_custom_call.1} parent=5 // pred_check_branch
        %124 = sbr.rel (%p121) target = $region12
      $region11: #{tpu_custom_call.1} parent=5 // pred_region
        %s125 = ssub.s32 %s17, 1
      $region12: #{tpu_custom_call.1} parent=5 // pred_fallthru
        _
      %p126 = scmp.lt.s32.totalorder %s17, 2
      // Predicated region
      $region13: #{tpu_custom_call.1} parent=5 // pred_check
        %p127 = pneg %p126
      $region14: #{tpu_custom_call.1} parent=5 // pred_check_branch
        %129 = sbr.rel (%p127) target = $region16
      $region15: #{tpu_custom_call.1} parent=5 // pred_region
        // Predicated region
        $region17: #{tpu_custom_call.1} parent=15 // pred_check
          %p130 = pneg %p51
        $region18: #{tpu_custom_call.1} parent=15 // pred_check_branch
          %132 = sbr.rel (%p130) target = $region20
        $region19: #{tpu_custom_call.1} parent=15 // pred_region
          %s133 = sand.u32 %s41, 1
          %s134 = scalar_lea.sflag [#allocation3], %s133
          %s135 = sand.u32 %s41, 1
          %s136 = smul.addr %s135, 8
          %s137 = scalar_lea.vmem [#allocation2], %s136
          %s138 = smul.u32 2, %s25
          %s140 = ssub.s32 128, 128
          %141 = vsyncadd %s134, %s140
          %s142 = smul.addr %s24, 2
          %s143 = sadd.s32 %s138, %s142
          %s144 = smul.addr %s143, 64
          %s145 = scalar_lea.hbm %s0, %s144
          %s147 = sshll.u32 %s137, 4
          %s148 = int_to_ptr.vmem [resolvable:$true] %s147
          %150 = dma.hbm_to_vmem [thread:$0]  %s145, 128, %s148, %s134
        $region20: #{tpu_custom_call.1} parent=15 // pred_fallthru
          _
        // Predicated region
        $region21: #{tpu_custom_call.1} parent=15 // pred_check
          %p151 = pneg %p79
        $region22: #{tpu_custom_call.1} parent=15 // pred_check_branch
          %153 = sbr.rel (%p151) target = $region24
        $region23: #{tpu_custom_call.1} parent=15 // pred_region
          %s154 = sand.u32 %s69, 1
          %s155 = scalar_lea.sflag [#allocation6], %s154
          %s156 = sand.u32 %s69, 1
          %s157 = smul.addr %s156, 8
          %s158 = scalar_lea.vmem [#allocation5], %s157
          %s159 = smul.u32 2, %s25
          %s161 = ssub.s32 128, 128
          %162 = vsyncadd %s155, %s161
          %s163 = smul.addr %s24, 2
          %s164 = sadd.s32 %s159, %s163
          %s165 = smul.addr %s164, 64
          %s166 = scalar_lea.hbm %s1, %s165
          %s168 = sshll.u32 %s158, 4
          %s169 = int_to_ptr.vmem [resolvable:$true] %s168
          %171 = dma.hbm_to_vmem [thread:$0]  %s166, 128, %s169, %s155
        $region24: #{tpu_custom_call.1} parent=15 // pred_fallthru
          _
      $region16: #{tpu_custom_call.1} parent=5 // pred_fallthru
        _
      %p172 = scmp.le.s32.totalorder 1, %s17
      %p173 = scmp.lt.s32.totalorder %s17, 3
      %p174 = pnand %p172, %p173
      %p175 = pneg %p174
      // Predicated region
      $region25: #{tpu_custom_call.1} parent=5 // pred_check
        _
      $region26: #{tpu_custom_call.1} parent=5 // pred_check_branch
        %177 = sbr.rel (%p174) target = $region28
      $region27: #{tpu_custom_call.1} parent=5 // pred_region
        %s178 = ssub.s32 %s17, 1
        %s179 = sand.u32 %s44, 1
        %s180 = scalar_lea.sflag [#allocation3], %s179
        %s181 = sand.u32 %s44, 1
        %s182 = smul.addr %s181, 8
        %s183 = scalar_lea.vmem [#allocation2], %s182
        // Predicated region
        $region29: #{tpu_custom_call.1} parent=27 // pred_check
          %p184 = pneg %p57
        $region30: #{tpu_custom_call.1} parent=27 // pred_check_branch
          %186 = sbr.rel (%p184) target = $region32
        $region31: #{tpu_custom_call.1} parent=27 // pred_region
          %187 = dma.done %s180, 128
        $region32: #{tpu_custom_call.1} parent=27 // pred_fallthru
          _
        %s188 = sand.u32 %s72, 1
        %s189 = scalar_lea.sflag [#allocation6], %s188
        %s190 = sand.u32 %s72, 1
        %s191 = smul.addr %s190, 8
        %s192 = scalar_lea.vmem [#allocation5], %s191
        // Predicated region
        $region33: #{tpu_custom_call.1} parent=27 // pred_check
          %p193 = pneg %p85
        $region34: #{tpu_custom_call.1} parent=27 // pred_check_branch
          %195 = sbr.rel (%p193) target = $region36
        $region35: #{tpu_custom_call.1} parent=27 // pred_region
          %196 = dma.done %s189, 128
        $region36: #{tpu_custom_call.1} parent=27 // pred_fallthru
          _
        %s197 = sand.u32 %s44, 1
        %s198 = scalar_lea.sflag [#allocation3], %s197
        %s199 = sand.u32 %s44, 1
        %s200 = smul.addr %s199, 8
        %s201 = scalar_lea.vmem [#allocation2], %s200
        %p202 = pneg %p57
        %p203 = pneg %p54
        %s204 = sand.u32 %s72, 1
        %s205 = scalar_lea.sflag [#allocation6], %s204
        %s206 = sand.u32 %s72, 1
        %s207 = smul.addr %s206, 8
        %s208 = scalar_lea.vmem [#allocation5], %s207
        %p209 = pneg %p85
        %p210 = pneg %p82
        %p211 = pneg %p111
        %p212 = pneg %p108
        %s213 = sand.u32 %s98, 1
        %s214 = scalar_lea.sflag [#allocation4], %s213
        %s215 = sand.u32 %s98, 1
        %s216 = smul.addr %s215, 2
        %s217 = scalar_lea.vmem [#allocation7], %s216
        %s218 = smul.u32 2, %s27
        %s219 = smul.u32 2, %s27
        %p220 = scmp.eq.s32.totalorder %s27, 0
        // Predicated region
        $region37: #{tpu_custom_call.1} parent=27 // pred_check
          %p221 = pneg %p220
        $region38: #{tpu_custom_call.1} parent=27 // pred_check_branch
          %223 = sbr.rel (%p221) target = $region40
        $region39: #{tpu_custom_call.1} parent=27 // pred_region
          %v224 = vlaneseq
          %vm225 = vcmp.ge.s32.totalorder %v224, 0
          %vm226 = vcmp.lt.s32.totalorder %v224, 256
          %vm227 = vmand %vm225, %vm226
          %228 = vst.msk [vmem:[%s217] sm:$0x3] %vm227, 0.0
        $region40: #{tpu_custom_call.1} parent=27 // pred_fallthru
          _
        %v229 = vld [vmem:[%s183] sm:$0xff]
        %v230 = vld [vmem:[%s192] sm:$0xff]
        %v232 = vcombine.high %v229, %v229
        %vm234 = vcmask 1043456
        %v235 = vsel %vm234, %v229, -inf
        %v236 = vrot.slane %v235, 4
        %v237 = vmax.f32 %v235, %v236
        %v238 = vrot.slane %v237, 2
        %v239 = vmax.f32 %v237, %v238
        %v240 = vrot.slane %v239, 1
        %v241 = vmax.f32 %v239, %v240
        %v242 = vsel %vm234, %v232, -inf
        %v243 = vrot.slane %v242, 4
        %v244 = vmax.f32 %v242, %v243
        %v245 = vrot.slane %v244, 2
        %v246 = vmax.f32 %v244, %v245
        %v247 = vrot.slane %v246, 1
        %v248 = vmax.f32 %v246, %v247
        %v251 = vcombine.low %v241, %v248
        %v253 = vsub.f32 %v229, %v251
        %v255 = vcombine.high %v230, %v230
        %v257 = vsel %vm234, %v230, -inf
        %v258 = vrot.slane %v257, 4
        %v259 = vmax.f32 %v257, %v258
        %v260 = vrot.slane %v259, 2
        %v261 = vmax.f32 %v259, %v260
        %v262 = vrot.slane %v261, 1
        %v263 = vmax.f32 %v261, %v262
        %v264 = vsel %vm234, %v255, -inf
        %v265 = vrot.slane %v264, 4
        %v266 = vmax.f32 %v264, %v265
        %v267 = vrot.slane %v266, 2
        %v268 = vmax.f32 %v266, %v267
        %v269 = vrot.slane %v268, 1
        %v270 = vmax.f32 %v268, %v269
        %v273 = vcombine.low %v263, %v270
        %v275 = vsub.f32 %v230, %v273
        %v276 = vmul.f32 %v253, 1.442695
        %v277 = vpow.pop %v276
        %v278 = vmul.f32 %v275, 1.442695
        %v279 = vpow.pop %v278
        %v281 = vcombine.high %v277, %v277
        %v283 = vsel %vm234, %v277, 0.0
        %v284 = vrot.slane %v283, 4
        %v285 = vadd.f32 %v283, %v284
        %v286 = vrot.slane %v285, 2
        %v287 = vadd.f32 %v285, %v286
        %v288 = vrot.slane %v287, 1
        %v289 = vadd.f32 %v287, %v288
        %v290 = vsel %vm234, %v281, 0.0
        %v291 = vrot.slane %v290, 4
        %v292 = vadd.f32 %v290, %v291
        %v293 = vrot.slane %v292, 2
        %v294 = vadd.f32 %v292, %v293
        %v295 = vrot.slane %v294, 1
        %v296 = vadd.f32 %v294, %v295
        %v298 = vcombine.high %v279, %v279
        %v300 = vsel %vm234, %v279, 0.0
        %v301 = vrot.slane %v300, 4
        %v302 = vadd.f32 %v300, %v301
        %v303 = vrot.slane %v302, 2
        %v304 = vadd.f32 %v302, %v303
        %v305 = vrot.slane %v304, 1
        %v306 = vadd.f32 %v304, %v305
        %v307 = vsel %vm234, %v298, 0.0
        %v308 = vrot.slane %v307, 4
        %v309 = vadd.f32 %v307, %v308
        %v310 = vrot.slane %v309, 2
        %v311 = vadd.f32 %v309, %v310
        %v312 = vrot.slane %v311, 1
        %v313 = vadd.f32 %v311, %v312
        %v314 = vrcp.pop %v289
        %v315 = vrcp.pop %v296
        %v316 = vmul.f32 %v289, %v314
        %v317 = vmul.f32 %v296, %v315
        %v318 = vsub.f32 2.0, %v316
        %v319 = vsub.f32 2.0, %v317
        %v320 = vmul.f32 %v314, %v318
        %v321 = vmul.f32 %v315, %v319
        %v322 = vrcp.pop %v306
        %v323 = vrcp.pop %v313
        %v324 = vmul.f32 %v306, %v322
        %v325 = vmul.f32 %v313, %v323
        %v326 = vsub.f32 2.0, %v324
        %v327 = vsub.f32 2.0, %v325
        %v328 = vmul.f32 %v322, %v326
        %v329 = vmul.f32 %v323, %v327
        %v332 = vcombine.low %v320, %v321
        %v334 = vmul.f32 %v277, %v332
        %v337 = vcombine.low %v328, %v329
        %v339 = vmul.f32 %v279, %v337
        %v340 = vsub.f32 %v334, %v339
        %v341 = vmul.f32 %v340, %v340
        %v343 = vcombine.high %v341, %v341
        %v345 = vsel %vm234, %v341, 0.0
        %v346 = vrot.slane %v345, 4
        %v347 = vadd.f32 %v345, %v346
        %v348 = vrot.slane %v347, 2
        %v349 = vadd.f32 %v347, %v348
        %v350 = vrot.slane %v349, 1
        %v351 = vadd.f32 %v349, %v350
        %v352 = vsel %vm234, %v343, 0.0
        %v353 = vrot.slane %v352, 4
        %v354 = vadd.f32 %v352, %v353
        %v355 = vrot.slane %v354, 2
        %v356 = vadd.f32 %v354, %v355
        %v357 = vrot.slane %v356, 1
        %v358 = vadd.f32 %v356, %v357
        %v359 = vld [vmem:[%s217] sm:$0x3]
        %v362 = vcombine.low %v351, %v358
        %v364 = vunpack.c.l.s4 1966171168
        %v365 = vunpack.c.0.s8 %v364
        %v366 = vlaneseq
        %v367 = vshrl.u32 %v366, 7
        %v368 = vsub.s32 %v365, %v367
        %v369 = vrot.slane %v362, %v368
        %v371 = vunpack.c.l.s4 1966171168
        %v372 = vunpack.c.0.s8 %v371
        %v373 = vlaneseq
        %v374 = vshrl.u32 %v373, 7
        %v375 = vsub.s32 %v372, %v374
        %v376 = vrot.slane %v369, %v375
        %v378 = vadd.f32 %v359, %v376
        %v379 = vlaneseq
        %vm380 = vcmp.ge.s32.totalorder %v379, 0
        %vm381 = vcmp.lt.s32.totalorder %v379, 256
        %vm382 = vmand %vm380, %vm381
        %383 = vst.msk [vmem:[%s217] sm:$0x3] %vm382, %v378
        %s384 = sand.u32 %s98, 1
        %s385 = scalar_lea.sflag [#allocation4], %s384
        %s386 = sand.u32 %s98, 1
        %s387 = smul.addr %s386, 2
        %s388 = scalar_lea.vmem [#allocation7], %s387
        // Predicated region
        $region41: #{tpu_custom_call.1} parent=27 // pred_check
          %p389 = pneg %p108
        $region42: #{tpu_custom_call.1} parent=27 // pred_check_branch
          %391 = sbr.rel (%p389) target = $region44
        $region43: #{tpu_custom_call.1} parent=27 // pred_region
          %s393 = ssub.s32 32, 32
          %394 = vsyncadd %s385, %s393
          %s395 = smul.addr %s26, 2
          %s396 = smul.addr %s395, 16
          %s397 = scalar_lea.hbm %s2, %s396
          %s399 = sshll.u32 %s388, 4
          %s400 = int_to_ptr.vmem [resolvable:$true] %s399
          %402 = dma.vmem_to_hbm [thread:$0]  %s400, 32, %s397, %s385
        $region44: #{tpu_custom_call.1} parent=27 // pred_fallthru
          _
      $region28: #{tpu_custom_call.1} parent=5 // pred_fallthru
        _
      %p403 = scmp.le.s32.totalorder 2, %s17
      // Predicated region
      $region45: #{tpu_custom_call.1} parent=5 // pred_check
        %p404 = pneg %p403
      $region46: #{tpu_custom_call.1} parent=5 // pred_check_branch
        %406 = sbr.rel (%p404) target = $region48
      $region47: #{tpu_custom_call.1} parent=5 // pred_region
        %s407 = ssub.s32 %s17, 2
        // Predicated region
        $region49: #{tpu_custom_call.1} parent=47 // pred_check
          %p408 = pneg %p114
        $region50: #{tpu_custom_call.1} parent=47 // pred_check_branch
          %410 = sbr.rel (%p408) target = $region52
        $region51: #{tpu_custom_call.1} parent=47 // pred_region
          %s411 = sand.u32 %s99, 1
          %s412 = scalar_lea.sflag [#allocation4], %s411
          %s413 = sand.u32 %s99, 1
          %s414 = smul.addr %s413, 2
          %s415 = scalar_lea.vmem [#allocation7], %s414
          %416 = dma.done %s412, 32
        $region52: #{tpu_custom_call.1} parent=47 // pred_fallthru
          _
      $region48: #{tpu_custom_call.1} parent=5 // pred_fallthru
        _
    $region6: #{tpu_custom_call.1} parent=1 // loop_footer
      %s21 = sadd.s32 1, %s17
    $region7: #{tpu_custom_call.1} parent=1 // loop_footer_branch
      %16 = sbr.rel target = $region3
    $region8: #{tpu_custom_call.1} parent=1 // loop_exit
      _
    %417 = vsyncpa [#allocation3], 1
    %s418 = scalar_lea.sflag [#allocation3], 1
    %419 = vsyncpa %s418, 1
    %420 = vsyncpa [#allocation6], 1
    %s421 = scalar_lea.sflag [#allocation6], 1
    %422 = vsyncpa %s421, 1
    %423 = vsyncpa [#allocation4], 1
    %s424 = scalar_lea.sflag [#allocation4], 1
    %425 = vsyncpa %s424, 1

</llo_original>
